<compile_context>
chip_gen: v6e
topology: v6e:2x2x1
jax: 0.10.0
libtpu: 0.0.40
codegen_flags: <defaults>
</compile_context>

<pallas_src>
import functools

import jax
import jax.numpy as jnp
from jax.experimental import pallas as pl
from jax.experimental.pallas import tpu as pltpu

EPS = 1e-5


def _bn_add_kernel(x_ref, res_ref, gb_ref, o_ref, *, eps, inv_count):
    # x_ref / res_ref / o_ref : (Cb, L) f32  (L need not be a multiple of 128;
    #                                          block == full array extent)
    # gb_ref                  : (Cb, 2) f32   col 0 = gamma, col 1 = beta
    x = x_ref[...]

    # One-pass statistics (lane-axis reductions; divide by true element count).
    s = jnp.sum(x, axis=1, keepdims=True)            # (Cb, 1)
    ss = jnp.sum(x * x, axis=1, keepdims=True)       # (Cb, 1)
    mean = s * inv_count                             # (Cb, 1)
    var = ss * inv_count - mean * mean               # biased variance (Cb, 1)
    inv_std = jax.lax.rsqrt(var + eps)               # EUP rsqrt        (Cb, 1)

    gamma = gb_ref[:, 0:1]                           # (Cb, 1)
    beta = gb_ref[:, 1:2]                            # (Cb, 1)

    # Fold BN into a single per-channel affine: y = x*scale + shift
    scale = gamma * inv_std                          # (Cb, 1)
    shift = beta - mean * scale                      # (Cb, 1)

    # Re-index the refs for the elementwise pass so x/res need not both stay
    # live in vregs across the whole tile (lets Mosaic stream vreg-by-vreg).
    o_ref[...] = x_ref[...] * scale + shift + res_ref[...]


def _num_channel_blocks(C):
    # Use both TensorCores on v7x (2 TCs/chip); single step on 1-TC chips
    # where an extra grid step is pure overhead.
    try:
        kind = jax.devices()[0].device_kind.lower()
        if "v7" in kind and C % 16 == 0:
            return 2
    except Exception:
        pass
    return 1


def batchnorm_add(x336, x323, gamma, beta, eps=EPS):
    """x336, x323: NCHW float arrays.  Returns BN(x336) + x323 (NCHW)."""
    N, C, H, W = x336.shape
    L = N * H * W

    # NCHW -> (C, N*H*W).  For N == 1 this is a pure relabeling (bitcast);
    # no padding, no extra copies.
    x_cl = jnp.transpose(x336, (1, 0, 2, 3)).reshape(C, L)
    r_cl = jnp.transpose(x323, (1, 0, 2, 3)).reshape(C, L)
    if x_cl.dtype != jnp.float32:
        x_cl = x_cl.astype(jnp.float32)
    if r_cl.dtype != jnp.float32:
        r_cl = r_cl.astype(jnp.float32)

    # Pack gamma/beta into one (C, 2) operand: a single tiny DMA instead of two.
    gb = jnp.stack(
        [gamma.astype(jnp.float32), beta.astype(jnp.float32)], axis=1
    )  # (C, 2)

    nb = _num_channel_blocks(C)
    Cb = C // nb  # 144 or 72: both multiples of 8 (sublane-aligned)

    kernel = functools.partial(_bn_add_kernel, eps=eps, inv_count=1.0 / L)

    out_cl = pl.pallas_call(
        kernel,
        out_shape=jax.ShapeDtypeStruct((C, L), jnp.float32),
        grid=(nb,),
        in_specs=[
            pl.BlockSpec((Cb, L), lambda i: (i, 0)),
            pl.BlockSpec((Cb, L), lambda i: (i, 0)),
            pl.BlockSpec((Cb, 2), lambda i: (i, 0)),
        ],
        out_specs=pl.BlockSpec((Cb, L), lambda i: (i, 0)),
        # Residual has the same shape/dtype as the output and is consumed
        # exactly once -> reuse its HBM buffer for the output.
        input_output_aliases={1: 0},
        compiler_params=pltpu.CompilerParams(
            dimension_semantics=("parallel",)
        ),
        cost_estimate=pl.CostEstimate(
            flops=5 * C * L,
            transcendentals=C,
            bytes_accessed=3 * C * L * 4 + C * 2 * 4,
        ),
    )(x_cl, r_cl, gb)

    # (C, N*H*W) -> NCHW.  For N == 1 this is again a pure relabeling.
    out = jnp.transpose(out_cl.reshape(C, N, H, W), (1, 0, 2, 3))
    return out.astype(x336.dtype)
    # TODO(synk): training-mode BatchNorm2d also updates running_mean /
    # running_var (unbiased variance); return mean/var as extra (C,) outputs
    # if the surrounding model needs the running-stat update.


def _reference(x336, x323, gamma, beta, eps=EPS):
    mean = jnp.mean(x336, axis=(0, 2, 3), keepdims=True)
    var = jnp.mean((x336 - mean) ** 2, axis=(0, 2, 3), keepdims=True)
    y = (x336 - mean) / jnp.sqrt(var + eps)
    y = y * gamma.reshape(1, -1, 1, 1) + beta.reshape(1, -1, 1, 1)
    return y + x323


if __name__ == "__main__":
    key = jax.random.PRNGKey(0)
    k1, k2 = jax.random.split(key)

    N, C, H, W = 1, 144, 14, 14
    x336 = jax.random.normal(k1, (N, C, H, W), dtype=jnp.float32)
    x323 = jax.random.normal(k2, (N, C, H, W), dtype=jnp.float32)

    # BatchNorm2d(144) default init: weight=1, bias=0 (training-mode batch
    # stats, matching the PyTorch module's default .train() behavior).
    gamma = jnp.ones((C,), dtype=jnp.float32)
    beta = jnp.zeros((C,), dtype=jnp.float32)

    out = batchnorm_add(x336, x323, gamma, beta)
    out = jax.block_until_ready(out)

    ref = _reference(x336, x323, gamma, beta)
    assert out.shape == (N, C, H, W)
    assert jnp.allclose(out, ref, atol=1e-4, rtol=1e-4)

    print("KERNEL_OK")
</pallas_src>

<mosaic_0001>
module attributes {stable_mosaic.version = 11 : i64} {
  func.func @_bn_add_kernel(%arg0: i32, %arg1: memref<144x196xf32, #tpu.memory_space<vmem>>, %arg2: memref<144x196xf32, #tpu.memory_space<vmem>>, %arg3: memref<144x2xf32, #tpu.memory_space<vmem>>, %arg4: memref<144x196xf32, #tpu.memory_space<vmem>>) attributes {dimension_semantics = [#tpu.dimension_semantics<parallel>], iteration_bounds = array<i64: 1>, scalar_prefetch = 0 : i64, scratch_operands = 0 : i64, tpu.core_type = #tpu.core_type<tc>, window_params = [{transform_indices = @transform_0, window_bounds = array<i64: 144, 196>}, {transform_indices = @transform_1, window_bounds = array<i64: 144, 196>}, {transform_indices = @transform_2, window_bounds = array<i64: 144, 2>}, {transform_indices = @transform_3, window_bounds = array<i64: 144, 196>}]} {
    %c0 = arith.constant 0 : index
    %c0_0 = arith.constant 0 : index
    %0 = vector.load %arg1[%c0, %c0_0] : memref<144x196xf32, #tpu.memory_space<vmem>>, vector<144x196xf32>
    %cst = arith.constant dense<0.000000e+00> : vector<144xf32>
    %1 = vector.multi_reduction <add>, %0, %cst [1] : vector<144x196xf32> to vector<144xf32>
    %2 = vector.shape_cast %1 : vector<144xf32> to vector<144x1xf32>
    %3 = arith.mulf %0, %0 : vector<144x196xf32>
    %cst_1 = arith.constant dense<0.000000e+00> : vector<144xf32>
    %4 = vector.multi_reduction <add>, %3, %cst_1 [1] : vector<144x196xf32> to vector<144xf32>
    %5 = vector.shape_cast %4 : vector<144xf32> to vector<144x1xf32>
    %cst_2 = arith.constant 0.00510204071 : f32
    %6 = vector.broadcast %cst_2 : f32 to vector<144x1xf32>
    %7 = arith.mulf %2, %6 : vector<144x1xf32>
    %cst_3 = arith.constant 0.00510204071 : f32
    %8 = vector.broadcast %cst_3 : f32 to vector<144x1xf32>
    %9 = arith.mulf %5, %8 : vector<144x1xf32>
    %10 = arith.mulf %7, %7 : vector<144x1xf32>
    %11 = arith.subf %9, %10 : vector<144x1xf32>
    %cst_4 = arith.constant 9.99999974E-6 : f32
    %12 = vector.broadcast %cst_4 : f32 to vector<144x1xf32>
    %13 = arith.addf %11, %12 : vector<144x1xf32>
    %14 = math.rsqrt %13 : vector<144x1xf32>
    %c0_5 = arith.constant 0 : index
    %c0_6 = arith.constant 0 : index
    %15 = vector.load %arg3[%c0_5, %c0_6] : memref<144x2xf32, #tpu.memory_space<vmem>>, vector<144x1xf32>
    %c0_7 = arith.constant 0 : index
    %c1 = arith.constant 1 : index
    %16 = vector.load %arg3[%c0_7, %c1] : memref<144x2xf32, #tpu.memory_space<vmem>>, vector<144x1xf32>
    %17 = arith.mulf %15, %14 : vector<144x1xf32>
    %18 = arith.mulf %7, %17 : vector<144x1xf32>
    %19 = arith.subf %16, %18 : vector<144x1xf32>
    %c0_8 = arith.constant 0 : index
    %c0_9 = arith.constant 0 : index
    %20 = vector.load %arg1[%c0_8, %c0_9] : memref<144x196xf32, #tpu.memory_space<vmem>>, vector<144x196xf32>
    %21 = vector.broadcast %17 : vector<144x1xf32> to vector<144x196xf32>
    %22 = arith.mulf %20, %21 : vector<144x196xf32>
    %23 = vector.broadcast %19 : vector<144x1xf32> to vector<144x196xf32>
    %24 = arith.addf %22, %23 : vector<144x196xf32>
    %c0_10 = arith.constant 0 : index
    %c0_11 = arith.constant 0 : index
    %25 = vector.load %arg2[%c0_10, %c0_11] : memref<144x196xf32, #tpu.memory_space<vmem>>, vector<144x196xf32>
    %26 = arith.addf %24, %25 : vector<144x196xf32>
    %c0_12 = arith.constant 0 : index
    %c0_13 = arith.constant 0 : index
    %27 = vector.load %arg4[%c0_12, %c0_13] : memref<144x196xf32, #tpu.memory_space<vmem>>, vector<144x196xf32>
    tpu.vector_store %arg4[%c0_12, %c0_13], %26 {strides = array<i32>} : memref<144x196xf32, #tpu.memory_space<vmem>>, vector<144x196xf32>,
    return
  }
  func.func @transform_0(%arg0: i32) -> (i32, i32) {
    %c0_i32 = arith.constant 0 : i32
    %c0_i32_0 = arith.constant 0 : i32
    return %arg0, %c0_i32 : i32, i32
  }
  func.func @transform_1(%arg0: i32) -> (i32, i32) {
    %c0_i32 = arith.constant 0 : i32
    %c0_i32_0 = arith.constant 0 : i32
    return %arg0, %c0_i32 : i32, i32
  }
  func.func @transform_2(%arg0: i32) -> (i32, i32) {
    %c0_i32 = arith.constant 0 : i32
    %c0_i32_0 = arith.constant 0 : i32
    return %arg0, %c0_i32 : i32, i32
  }
  func.func @transform_3(%arg0: i32) -> (i32, i32) {
    %c0_i32 = arith.constant 0 : i32
    %c0_i32_0 = arith.constant 0 : i32
    return %arg0, %c0_i32 : i32, i32
  }
}

</mosaic_0001>

<llo_original>
// kernel: tpu_custom_call.1
$region0: #{tpu_custom_call.1}
  #allocation0 [shape = 'u32[]', space=smem, size = 0x4, offset = 0x4, fixed_abs, tag = 'smem constant byte address 0x4 - core index']
  #allocation1 [shape = 'u32[144,128]{1,0:T(1,128)}', space=vmem, size = 0x12000, scoped, tag = 'internal scratch']
  %s0 = inlined_call_operand.vmem [shape: f32[144,196], index: 0, kind: input, shape index: {}]
  %s1 = inlined_call_operand.hbm [shape: f32[144,196], index: 1, kind: input, shape index: {}, may-alias: {1,3}]
  %s2 = inlined_call_operand.vmem [shape: f32[144,2], index: 2, kind: input, shape index: {}]
  %s3 = inlined_call_operand.hbm [shape: f32[144,196], index: 3, kind: output, shape index: {}, may-alias: {1,3}]
  %s4 = sld [smem:[#allocation0]]
  $region26: #{tpu_custom_call.1} parent=0
    _
  %s6 = ssub.s32 1, %s4
  %s7 = scalar_select 0, %s6, %s4
  $region1: #{tpu_custom_call.1} parent=0
    #allocation2 [shape = 'u8[147456]{0}', space=vmem, size = 0x24000, scoped, tag = 'input window, operand 1, single buffered']
    #allocation3 [shape = 's32[1]{0}', space=sflag, size = 0x4, scoped, tag = 'scoped memory for tpu_custom_call.1']
    #allocation4 [shape = 's32[1]{0}', space=sflag, size = 0x4, scoped, tag = 'scoped memory for tpu_custom_call.1']
    #allocation5 [shape = 'u8[147456]{0}', space=vmem, size = 0x24000, scoped, tag = 'output window, operand 0, single buffered']
    %8 = vsyncpa [#allocation3], 0
    %9 = vsyncpa [#allocation4], 0
    // Predicated region
    $region2: #{tpu_custom_call.1} parent=1 // pred_check
      _
    $region3: #{tpu_custom_call.1} parent=1 // pred_check_branch
      %11 = sbr.rel (0) target = $region5
    $region4: #{tpu_custom_call.1} parent=1 // pred_region
      _
    $region5: #{tpu_custom_call.1} parent=1 // pred_fallthru
      _
    // Predicated region
    $region6: #{tpu_custom_call.1} parent=1 // pred_check
      _
    $region7: #{tpu_custom_call.1} parent=1 // pred_check_branch
      %13 = sbr.rel (0) target = $region9
    $region8: #{tpu_custom_call.1} parent=1 // pred_region
      %s15 = ssub.s32 4608, 4608
      %16 = vsyncadd [#allocation3], %s15
      %s17 = sshll.u32 [#allocation2], 4
      %s18 = int_to_ptr.vmem [resolvable:$true] %s17
      %23 = dma.hbm_to_vmem [thread:$0]  %s1, 4608, %s18, [#allocation3], 256, 256, 16
    $region9: #{tpu_custom_call.1} parent=1 // pred_fallthru
      _
    // Predicated region
    $region10: #{tpu_custom_call.1} parent=1 // pred_check
      _
    $region11: #{tpu_custom_call.1} parent=1 // pred_check_branch
      %25 = sbr.rel (0) target = $region13
    $region12: #{tpu_custom_call.1} parent=1 // pred_region
      _
    $region13: #{tpu_custom_call.1} parent=1 // pred_fallthru
      _
    // Predicated region
    $region14: #{tpu_custom_call.1} parent=1 // pred_check
      _
    $region15: #{tpu_custom_call.1} parent=1 // pred_check_branch
      %27 = sbr.rel (0) target = $region17
    $region16: #{tpu_custom_call.1} parent=1 // pred_region
      %28 = dma.done [#allocation3], 4608
    $region17: #{tpu_custom_call.1} parent=1 // pred_fallthru
      _
    %v29 = vld [vmem:[%s0] sm:$0xff]
    %v30 = vld [vmem:[%s0 + $0x8] sm:$0xff]
    %v31 = vld [vmem:[%s0 + $0x10] sm:$0xff]
    %v32 = vld [vmem:[%s0 + $0x18] sm:$0xff]
    %v33 = vld [vmem:[%s0 + $0x20] sm:$0xff]
    %v34 = vld [vmem:[%s0 + $0x28] sm:$0xff]
    %v35 = vld [vmem:[%s0 + $0x30] sm:$0xff]
    %v36 = vld [vmem:[%s0 + $0x38] sm:$0xff]
    %v37 = vld [vmem:[%s0 + $0x40] sm:$0xff]
    %v38 = vld [vmem:[%s0 + $0x48] sm:$0xff]
    %v39 = vld [vmem:[%s0 + $0x50] sm:$0xff]
    %v40 = vld [vmem:[%s0 + $0x58] sm:$0xff]
    %v41 = vld [vmem:[%s0 + $0x60] sm:$0xff]
    %v42 = vld [vmem:[%s0 + $0x68] sm:$0xff]
    %v43 = vld [vmem:[%s0 + $0x70] sm:$0xff]
    %v44 = vld [vmem:[%s0 + $0x78] sm:$0xff]
    %v45 = vld [vmem:[%s0 + $0x80] sm:$0xff]
    %v46 = vld [vmem:[%s0 + $0x88] sm:$0xff]
    %v47 = vld [vmem:[%s0 + $0x90] sm:$0xff]
    %v48 = vld [vmem:[%s0 + $0x98] sm:$0xff]
    %v49 = vld [vmem:[%s0 + $0xa0] sm:$0xff]
    %v50 = vld [vmem:[%s0 + $0xa8] sm:$0xff]
    %v51 = vld [vmem:[%s0 + $0xb0] sm:$0xff]
    %v52 = vld [vmem:[%s0 + $0xb8] sm:$0xff]
    %v53 = vld [vmem:[%s0 + $0xc0] sm:$0xff]
    %v54 = vld [vmem:[%s0 + $0xc8] sm:$0xff]
    %v55 = vld [vmem:[%s0 + $0xd0] sm:$0xff]
    %v56 = vld [vmem:[%s0 + $0xd8] sm:$0xff]
    %v57 = vld [vmem:[%s0 + $0xe0] sm:$0xff]
    %v58 = vld [vmem:[%s0 + $0xe8] sm:$0xff]
    %v59 = vld [vmem:[%s0 + $0xf0] sm:$0xff]
    %v60 = vld [vmem:[%s0 + $0xf8] sm:$0xff]
    %v61 = vld [vmem:[%s0 + $0x100] sm:$0xff]
    %v62 = vld [vmem:[%s0 + $0x108] sm:$0xff]
    %v63 = vld [vmem:[%s0 + $0x110] sm:$0xff]
    %v64 = vld [vmem:[%s0 + $0x118] sm:$0xff]
    %vm65 = vcmask 556032
    %v66 = vsel %vm65, %v30, 0.0
    %v67 = vadd.f32 %v29, %v66
    %68 = vadd.xlane.f32.xlu0 %v67
    %v69 = vpop.xlane.xlu0 %68
    %v70 = vsel %vm65, %v32, 0.0
    %v71 = vadd.f32 %v31, %v70
    %72 = vadd.xlane.f32.xlu0 %v71
    %v73 = vpop.xlane.xlu0 %72
    %v74 = vsel %vm65, %v34, 0.0
    %v75 = vadd.f32 %v33, %v74
    %76 = vadd.xlane.f32.xlu0 %v75
    %v77 = vpop.xlane.xlu0 %76
    %v78 = vsel %vm65, %v36, 0.0
    %v79 = vadd.f32 %v35, %v78
    %80 = vadd.xlane.f32.xlu0 %v79
    %v81 = vpop.xlane.xlu0 %80
    %v82 = vsel %vm65, %v38, 0.0
    %v83 = vadd.f32 %v37, %v82
    %84 = vadd.xlane.f32.xlu0 %v83
    %v85 = vpop.xlane.xlu0 %84
    %v86 = vsel %vm65, %v40, 0.0
    %v87 = vadd.f32 %v39, %v86
    %88 = vadd.xlane.f32.xlu0 %v87
    %v89 = vpop.xlane.xlu0 %88
    %v90 = vsel %vm65, %v42, 0.0
    %v91 = vadd.f32 %v41, %v90
    %92 = vadd.xlane.f32.xlu0 %v91
    %v93 = vpop.xlane.xlu0 %92
    %v94 = vsel %vm65, %v44, 0.0
    %v95 = vadd.f32 %v43, %v94
    %96 = vadd.xlane.f32.xlu0 %v95
    %v97 = vpop.xlane.xlu0 %96
    %v98 = vsel %vm65, %v46, 0.0
    %v99 = vadd.f32 %v45, %v98
    %100 = vadd.xlane.f32.xlu0 %v99
    %v101 = vpop.xlane.xlu0 %100
    %v102 = vsel %vm65, %v48, 0.0
    %v103 = vadd.f32 %v47, %v102
    %104 = vadd.xlane.f32.xlu0 %v103
    %v105 = vpop.xlane.xlu0 %104
    %v106 = vsel %vm65, %v50, 0.0
    %v107 = vadd.f32 %v49, %v106
    %108 = vadd.xlane.f32.xlu0 %v107
    %v109 = vpop.xlane.xlu0 %108
    %v110 = vsel %vm65, %v52, 0.0
    %v111 = vadd.f32 %v51, %v110
    %112 = vadd.xlane.f32.xlu0 %v111
    %v113 = vpop.xlane.xlu0 %112
    %v114 = vsel %vm65, %v54, 0.0
    %v115 = vadd.f32 %v53, %v114
    %116 = vadd.xlane.f32.xlu0 %v115
    %v117 = vpop.xlane.xlu0 %116
    %v118 = vsel %vm65, %v56, 0.0
    %v119 = vadd.f32 %v55, %v118
    %120 = vadd.xlane.f32.xlu0 %v119
    %v121 = vpop.xlane.xlu0 %120
    %v122 = vsel %vm65, %v58, 0.0
    %v123 = vadd.f32 %v57, %v122
    %124 = vadd.xlane.f32.xlu0 %v123
    %v125 = vpop.xlane.xlu0 %124
    %v126 = vsel %vm65, %v60, 0.0
    %v127 = vadd.f32 %v59, %v126
    %128 = vadd.xlane.f32.xlu0 %v127
    %v129 = vpop.xlane.xlu0 %128
    %v130 = vsel %vm65, %v62, 0.0
    %v131 = vadd.f32 %v61, %v130
    %132 = vadd.xlane.f32.xlu0 %v131
    %v133 = vpop.xlane.xlu0 %132
    %v134 = vsel %vm65, %v64, 0.0
    %v135 = vadd.f32 %v63, %v134
    %136 = vadd.xlane.f32.xlu0 %v135
    %v137 = vpop.xlane.xlu0 %136
    %v138 = vmul.f32 %v29, %v29
    %v139 = vmul.f32 %v30, %v30
    %v140 = vmul.f32 %v31, %v31
    %v141 = vmul.f32 %v32, %v32
    %v142 = vmul.f32 %v33, %v33
    %v143 = vmul.f32 %v34, %v34
    %v144 = vmul.f32 %v35, %v35
    %v145 = vmul.f32 %v36, %v36
    %v146 = vmul.f32 %v37, %v37
    %v147 = vmul.f32 %v38, %v38
    %v148 = vmul.f32 %v39, %v39
    %v149 = vmul.f32 %v40, %v40
    %v150 = vmul.f32 %v41, %v41
    %v151 = vmul.f32 %v42, %v42
    %v152 = vmul.f32 %v43, %v43
    %v153 = vmul.f32 %v44, %v44
    %v154 = vmul.f32 %v45, %v45
    %v155 = vmul.f32 %v46, %v46
    %v156 = vmul.f32 %v47, %v47
    %v157 = vmul.f32 %v48, %v48
    %v158 = vmul.f32 %v49, %v49
    %v159 = vmul.f32 %v50, %v50
    %v160 = vmul.f32 %v51, %v51
    %v161 = vmul.f32 %v52, %v52
    %v162 = vmul.f32 %v53, %v53
    %v163 = vmul.f32 %v54, %v54
    %v164 = vmul.f32 %v55, %v55
    %v165 = vmul.f32 %v56, %v56
    %v166 = vmul.f32 %v57, %v57
    %v167 = vmul.f32 %v58, %v58
    %v168 = vmul.f32 %v59, %v59
    %v169 = vmul.f32 %v60, %v60
    %v170 = vmul.f32 %v61, %v61
    %v171 = vmul.f32 %v62, %v62
    %v172 = vmul.f32 %v63, %v63
    %v173 = vmul.f32 %v64, %v64
    %v174 = vsel %vm65, %v139, 0.0
    %v175 = vadd.f32 %v138, %v174
    %176 = vadd.xlane.f32.xlu0 %v175
    %v177 = vpop.xlane.xlu0 %176
    %v178 = vsel %vm65, %v141, 0.0
    %v179 = vadd.f32 %v140, %v178
    %180 = vadd.xlane.f32.xlu0 %v179
    %v181 = vpop.xlane.xlu0 %180
    %v182 = vsel %vm65, %v143, 0.0
    %v183 = vadd.f32 %v142, %v182
    %184 = vadd.xlane.f32.xlu0 %v183
    %v185 = vpop.xlane.xlu0 %184
    %v186 = vsel %vm65, %v145, 0.0
    %v187 = vadd.f32 %v144, %v186
    %188 = vadd.xlane.f32.xlu0 %v187
    %v189 = vpop.xlane.xlu0 %188
    %v190 = vsel %vm65, %v147, 0.0
    %v191 = vadd.f32 %v146, %v190
    %192 = vadd.xlane.f32.xlu0 %v191
    %v193 = vpop.xlane.xlu0 %192
    %v194 = vsel %vm65, %v149, 0.0
    %v195 = vadd.f32 %v148, %v194
    %196 = vadd.xlane.f32.xlu0 %v195
    %v197 = vpop.xlane.xlu0 %196
    %v198 = vsel %vm65, %v151, 0.0
    %v199 = vadd.f32 %v150, %v198
    %200 = vadd.xlane.f32.xlu0 %v199
    %v201 = vpop.xlane.xlu0 %200
    %v202 = vsel %vm65, %v153, 0.0
    %v203 = vadd.f32 %v152, %v202
    %204 = vadd.xlane.f32.xlu0 %v203
    %v205 = vpop.xlane.xlu0 %204
    %v206 = vsel %vm65, %v155, 0.0
    %v207 = vadd.f32 %v154, %v206
    %208 = vadd.xlane.f32.xlu0 %v207
    %v209 = vpop.xlane.xlu0 %208
    %v210 = vsel %vm65, %v157, 0.0
    %v211 = vadd.f32 %v156, %v210
    %212 = vadd.xlane.f32.xlu0 %v211
    %v213 = vpop.xlane.xlu0 %212
    %v214 = vsel %vm65, %v159, 0.0
    %v215 = vadd.f32 %v158, %v214
    %216 = vadd.xlane.f32.xlu0 %v215
    %v217 = vpop.xlane.xlu0 %216
    %v218 = vsel %vm65, %v161, 0.0
    %v219 = vadd.f32 %v160, %v218
    %220 = vadd.xlane.f32.xlu0 %v219
    %v221 = vpop.xlane.xlu0 %220
    %v222 = vsel %vm65, %v163, 0.0
    %v223 = vadd.f32 %v162, %v222
    %224 = vadd.xlane.f32.xlu0 %v223
    %v225 = vpop.xlane.xlu0 %224
    %v226 = vsel %vm65, %v165, 0.0
    %v227 = vadd.f32 %v164, %v226
    %228 = vadd.xlane.f32.xlu0 %v227
    %v229 = vpop.xlane.xlu0 %228
    %v230 = vsel %vm65, %v167, 0.0
    %v231 = vadd.f32 %v166, %v230
    %232 = vadd.xlane.f32.xlu0 %v231
    %v233 = vpop.xlane.xlu0 %232
    %v234 = vsel %vm65, %v169, 0.0
    %v235 = vadd.f32 %v168, %v234
    %236 = vadd.xlane.f32.xlu0 %v235
    %v237 = vpop.xlane.xlu0 %236
    %v238 = vsel %vm65, %v171, 0.0
    %v239 = vadd.f32 %v170, %v238
    %240 = vadd.xlane.f32.xlu0 %v239
    %v241 = vpop.xlane.xlu0 %240
    %v242 = vsel %vm65, %v173, 0.0
    %v243 = vadd.f32 %v172, %v242
    %244 = vadd.xlane.f32.xlu0 %v243
    %v245 = vpop.xlane.xlu0 %244
    %v246 = vmul.f32 %v69, 0.0051020407
    %v247 = vmul.f32 %v73, 0.0051020407
    %v248 = vmul.f32 %v77, 0.0051020407
    %v249 = vmul.f32 %v81, 0.0051020407
    %v250 = vmul.f32 %v85, 0.0051020407
    %v251 = vmul.f32 %v89, 0.0051020407
    %v252 = vmul.f32 %v93, 0.0051020407
    %v253 = vmul.f32 %v97, 0.0051020407
    %v254 = vmul.f32 %v101, 0.0051020407
    %v255 = vmul.f32 %v105, 0.0051020407
    %v256 = vmul.f32 %v109, 0.0051020407
    %v257 = vmul.f32 %v113, 0.0051020407
    %v258 = vmul.f32 %v117, 0.0051020407
    %v259 = vmul.f32 %v121, 0.0051020407
    %v260 = vmul.f32 %v125, 0.0051020407
    %v261 = vmul.f32 %v129, 0.0051020407
    %v262 = vmul.f32 %v133, 0.0051020407
    %v263 = vmul.f32 %v137, 0.0051020407
    %v264 = vmul.f32 %v177, 0.0051020407
    %v265 = vmul.f32 %v181, 0.0051020407
    %v266 = vmul.f32 %v185, 0.0051020407
    %v267 = vmul.f32 %v189, 0.0051020407
    %v268 = vmul.f32 %v193, 0.0051020407
    %v269 = vmul.f32 %v197, 0.0051020407
    %v270 = vmul.f32 %v201, 0.0051020407
    %v271 = vmul.f32 %v205, 0.0051020407
    %v272 = vmul.f32 %v209, 0.0051020407
    %v273 = vmul.f32 %v213, 0.0051020407
    %v274 = vmul.f32 %v217, 0.0051020407
    %v275 = vmul.f32 %v221, 0.0051020407
    %v276 = vmul.f32 %v225, 0.0051020407
    %v277 = vmul.f32 %v229, 0.0051020407
    %v278 = vmul.f32 %v233, 0.0051020407
    %v279 = vmul.f32 %v237, 0.0051020407
    %v280 = vmul.f32 %v241, 0.0051020407
    %v281 = vmul.f32 %v245, 0.0051020407
    %v282 = vmul.f32 %v246, %v246
    %v283 = vmul.f32 %v247, %v247
    %v284 = vmul.f32 %v248, %v248
    %v285 = vmul.f32 %v249, %v249
    %v286 = vmul.f32 %v250, %v250
    %v287 = vmul.f32 %v251, %v251
    %v288 = vmul.f32 %v252, %v252
    %v289 = vmul.f32 %v253, %v253
    %v290 = vmul.f32 %v254, %v254
    %v291 = vmul.f32 %v255, %v255
    %v292 = vmul.f32 %v256, %v256
    %v293 = vmul.f32 %v257, %v257
    %v294 = vmul.f32 %v258, %v258
    %v295 = vmul.f32 %v259, %v259
    %v296 = vmul.f32 %v260, %v260
    %v297 = vmul.f32 %v261, %v261
    %v298 = vmul.f32 %v262, %v262
    %v299 = vmul.f32 %v263, %v263
    %v300 = vsub.f32 %v264, %v282
    %v301 = vsub.f32 %v265, %v283
    %v302 = vsub.f32 %v266, %v284
    %v303 = vsub.f32 %v267, %v285
    %v304 = vsub.f32 %v268, %v286
    %v305 = vsub.f32 %v269, %v287
    %v306 = vsub.f32 %v270, %v288
    %v307 = vsub.f32 %v271, %v289
    %v308 = vsub.f32 %v272, %v290
    %v309 = vsub.f32 %v273, %v291
    %v310 = vsub.f32 %v274, %v292
    %v311 = vsub.f32 %v275, %v293
    %v312 = vsub.f32 %v276, %v294
    %v313 = vsub.f32 %v277, %v295
    %v314 = vsub.f32 %v278, %v296
    %v315 = vsub.f32 %v279, %v297
    %v316 = vsub.f32 %v280, %v298
    %v317 = vsub.f32 %v281, %v299
    %v318 = vadd.f32 %v300, 1e-05
    %v319 = vadd.f32 %v301, 1e-05
    %v320 = vadd.f32 %v302, 1e-05
    %v321 = vadd.f32 %v303, 1e-05
    %v322 = vadd.f32 %v304, 1e-05
    %v323 = vadd.f32 %v305, 1e-05
    %v324 = vadd.f32 %v306, 1e-05
    %v325 = vadd.f32 %v307, 1e-05
    %v326 = vadd.f32 %v308, 1e-05
    %v327 = vadd.f32 %v309, 1e-05
    %v328 = vadd.f32 %v310, 1e-05
    %v329 = vadd.f32 %v311, 1e-05
    %v330 = vadd.f32 %v312, 1e-05
    %v331 = vadd.f32 %v313, 1e-05
    %v332 = vadd.f32 %v314, 1e-05
    %v333 = vadd.f32 %v315, 1e-05
    %v334 = vadd.f32 %v316, 1e-05
    %v335 = vadd.f32 %v317, 1e-05
    %v336 = vrsqrt.pop %v318
    %v337 = vrsqrt.pop %v319
    %v338 = vrsqrt.pop %v320
    %v339 = vrsqrt.pop %v321
    %v340 = vrsqrt.pop %v322
    %v341 = vrsqrt.pop %v323
    %v342 = vrsqrt.pop %v324
    %v343 = vrsqrt.pop %v325
    %v344 = vrsqrt.pop %v326
    %v345 = vrsqrt.pop %v327
    %v346 = vrsqrt.pop %v328
    %v347 = vrsqrt.pop %v329
    %v348 = vrsqrt.pop %v330
    %v349 = vrsqrt.pop %v331
    %v350 = vrsqrt.pop %v332
    %v351 = vrsqrt.pop %v333
    %v352 = vrsqrt.pop %v334
    %v353 = vrsqrt.pop %v335
    %v354 = vld [vmem:[%s2] sm:$0xff]
    %v355 = vld [vmem:[%s2 + $0x8] sm:$0xff]
    %v356 = vld [vmem:[%s2 + $0x10] sm:$0xff]
    %v357 = vld [vmem:[%s2 + $0x18] sm:$0xff]
    %v358 = vld [vmem:[%s2 + $0x20] sm:$0xff]
    %v359 = vld [vmem:[%s2 + $0x28] sm:$0xff]
    %v360 = vld [vmem:[%s2 + $0x30] sm:$0xff]
    %v361 = vld [vmem:[%s2 + $0x38] sm:$0xff]
    %v362 = vld [vmem:[%s2 + $0x40] sm:$0xff]
    %v363 = vld [vmem:[%s2 + $0x48] sm:$0xff]
    %v364 = vld [vmem:[%s2 + $0x50] sm:$0xff]
    %v365 = vld [vmem:[%s2 + $0x58] sm:$0xff]
    %v366 = vld [vmem:[%s2 + $0x60] sm:$0xff]
    %v367 = vld [vmem:[%s2 + $0x68] sm:$0xff]
    %v368 = vld [vmem:[%s2 + $0x70] sm:$0xff]
    %v369 = vld [vmem:[%s2 + $0x78] sm:$0xff]
    %v370 = vld [vmem:[%s2 + $0x80] sm:$0xff]
    %v371 = vld [vmem:[%s2 + $0x88] sm:$0xff]
    %v372 = vmul.f32 %v354, %v336
    %v373 = vmul.f32 %v355, %v337
    %v374 = vmul.f32 %v356, %v338
    %v375 = vmul.f32 %v357, %v339
    %v376 = vmul.f32 %v358, %v340
    %v377 = vmul.f32 %v359, %v341
    %v378 = vmul.f32 %v360, %v342
    %v379 = vmul.f32 %v361, %v343
    %v380 = vmul.f32 %v362, %v344
    %v381 = vmul.f32 %v363, %v345
    %v382 = vmul.f32 %v364, %v346
    %v383 = vmul.f32 %v365, %v347
    %v384 = vmul.f32 %v366, %v348
    %v385 = vmul.f32 %v367, %v349
    %v386 = vmul.f32 %v368, %v350
    %v387 = vmul.f32 %v369, %v351
    %v388 = vmul.f32 %v370, %v352
    %v389 = vmul.f32 %v371, %v353
    %v390 = vmul.f32 %v246, %v372
    %v391 = vmul.f32 %v247, %v373
    %v392 = vmul.f32 %v248, %v374
    %v393 = vmul.f32 %v249, %v375
    %v394 = vmul.f32 %v250, %v376
    %v395 = vmul.f32 %v251, %v377
    %v396 = vmul.f32 %v252, %v378
    %v397 = vmul.f32 %v253, %v379
    %v398 = vmul.f32 %v254, %v380
    %v399 = vmul.f32 %v255, %v381
    %v400 = vmul.f32 %v256, %v382
    %v401 = vmul.f32 %v257, %v383
    %v402 = vmul.f32 %v258, %v384
    %v403 = vmul.f32 %v259, %v385
    %v404 = vmul.f32 %v260, %v386
    %v405 = vmul.f32 %v261, %v387
    %v406 = vmul.f32 %v262, %v388
    %v407 = vmul.f32 %v263, %v389
    %426 = vrot.lane.b32.xlu0 %v390, 1
    %v427 = vpop.permute.xlu0 %426
    %428 = vrot.lane.b32.xlu0 %v391, 1
    %v429 = vpop.permute.xlu0 %428
    %430 = vrot.lane.b32.xlu0 %v392, 1
    %v431 = vpop.permute.xlu0 %430
    %432 = vrot.lane.b32.xlu0 %v393, 1
    %v433 = vpop.permute.xlu0 %432
    %434 = vrot.lane.b32.xlu0 %v394, 1
    %v435 = vpop.permute.xlu0 %434
    %436 = vrot.lane.b32.xlu0 %v395, 1
    %v437 = vpop.permute.xlu0 %436
    %438 = vrot.lane.b32.xlu0 %v396, 1
    %v439 = vpop.permute.xlu0 %438
    %440 = vrot.lane.b32.xlu0 %v397, 1
    %v441 = vpop.permute.xlu0 %440
    %442 = vrot.lane.b32.xlu0 %v398, 1
    %v443 = vpop.permute.xlu0 %442
    %444 = vrot.lane.b32.xlu0 %v399, 1
    %v445 = vpop.permute.xlu0 %444
    %446 = vrot.lane.b32.xlu0 %v400, 1
    %v447 = vpop.permute.xlu0 %446
    %448 = vrot.lane.b32.xlu0 %v401, 1
    %v449 = vpop.permute.xlu0 %448
    %450 = vrot.lane.b32.xlu0 %v402, 1
    %v451 = vpop.permute.xlu0 %450
    %452 = vrot.lane.b32.xlu0 %v403, 1
    %v453 = vpop.permute.xlu0 %452
    %454 = vrot.lane.b32.xlu0 %v404, 1
    %v455 = vpop.permute.xlu0 %454
    %456 = vrot.lane.b32.xlu0 %v405, 1
    %v457 = vpop.permute.xlu0 %456
    %458 = vrot.lane.b32.xlu0 %v406, 1
    %v459 = vpop.permute.xlu0 %458
    %460 = vrot.lane.b32.xlu0 %v407, 1
    %v461 = vpop.permute.xlu0 %460
    %v480 = vsub.f32 %v354, %v427
    %v481 = vsub.f32 %v355, %v429
    %v482 = vsub.f32 %v356, %v431
    %v483 = vsub.f32 %v357, %v433
    %v484 = vsub.f32 %v358, %v435
    %v485 = vsub.f32 %v359, %v437
    %v486 = vsub.f32 %v360, %v439
    %v487 = vsub.f32 %v361, %v441
    %v488 = vsub.f32 %v362, %v443
    %v489 = vsub.f32 %v363, %v445
    %v490 = vsub.f32 %v364, %v447
    %v491 = vsub.f32 %v365, %v449
    %v492 = vsub.f32 %v366, %v451
    %v493 = vsub.f32 %v367, %v453
    %v494 = vsub.f32 %v368, %v455
    %v495 = vsub.f32 %v369, %v457
    %v496 = vsub.f32 %v370, %v459
    %v497 = vsub.f32 %v371, %v461
    %499 = vset.pattern.permute.xlu0 0
    %500 = vperm.xlu0 %499, %v372
    %v501 = vpop.permute.xlu0 %500
    %504 = vset.pattern.permute.xlu0 0
    %505 = vperm.xlu0 %504, %v373
    %v506 = vpop.permute.xlu0 %505
    %509 = vset.pattern.permute.xlu0 0
    %510 = vperm.xlu0 %509, %v374
    %v511 = vpop.permute.xlu0 %510
    %514 = vset.pattern.permute.xlu0 0
    %515 = vperm.xlu0 %514, %v375
    %v516 = vpop.permute.xlu0 %515
    %519 = vset.pattern.permute.xlu0 0
    %520 = vperm.xlu0 %519, %v376
    %v521 = vpop.permute.xlu0 %520
    %524 = vset.pattern.permute.xlu0 0
    %525 = vperm.xlu0 %524, %v377
    %v526 = vpop.permute.xlu0 %525
    %529 = vset.pattern.permute.xlu0 0
    %530 = vperm.xlu0 %529, %v378
    %v531 = vpop.permute.xlu0 %530
    %534 = vset.pattern.permute.xlu0 0
    %535 = vperm.xlu0 %534, %v379
    %v536 = vpop.permute.xlu0 %535
    %539 = vset.pattern.permute.xlu0 0
    %540 = vperm.xlu0 %539, %v380
    %v541 = vpop.permute.xlu0 %540
    %544 = vset.pattern.permute.xlu0 0
    %545 = vperm.xlu0 %544, %v381
    %v546 = vpop.permute.xlu0 %545
    %549 = vset.pattern.permute.xlu0 0
    %550 = vperm.xlu0 %549, %v382
    %v551 = vpop.permute.xlu0 %550
    %554 = vset.pattern.permute.xlu0 0
    %555 = vperm.xlu0 %554, %v383
    %v556 = vpop.permute.xlu0 %555
    %559 = vset.pattern.permute.xlu0 0
    %560 = vperm.xlu0 %559, %v384
    %v561 = vpop.permute.xlu0 %560
    %564 = vset.pattern.permute.xlu0 0
    %565 = vperm.xlu0 %564, %v385
    %v566 = vpop.permute.xlu0 %565
    %569 = vset.pattern.permute.xlu0 0
    %570 = vperm.xlu0 %569, %v386
    %v571 = vpop.permute.xlu0 %570
    %574 = vset.pattern.permute.xlu0 0
    %575 = vperm.xlu0 %574, %v387
    %v576 = vpop.permute.xlu0 %575
    %579 = vset.pattern.permute.xlu0 0
    %580 = vperm.xlu0 %579, %v388
    %v581 = vpop.permute.xlu0 %580
    %584 = vset.pattern.permute.xlu0 0
    %585 = vperm.xlu0 %584, %v389
    %v586 = vpop.permute.xlu0 %585
    %v588 = vmul.f32 %v29, %v501
    %v589 = vmul.f32 %v30, %v501
    %v590 = vmul.f32 %v31, %v506
    %v591 = vmul.f32 %v32, %v506
    %v592 = vmul.f32 %v33, %v511
    %v593 = vmul.f32 %v34, %v511
    %v594 = vmul.f32 %v35, %v516
    %v595 = vmul.f32 %v36, %v516
    %v596 = vmul.f32 %v37, %v521
    %v597 = vmul.f32 %v38, %v521
    %v598 = vmul.f32 %v39, %v526
    %v599 = vmul.f32 %v40, %v526
    %v600 = vmul.f32 %v41, %v531
    %v601 = vmul.f32 %v42, %v531
    %v602 = vmul.f32 %v43, %v536
    %v603 = vmul.f32 %v44, %v536
    %v604 = vmul.f32 %v45, %v541
    %v605 = vmul.f32 %v46, %v541
    %v606 = vmul.f32 %v47, %v546
    %v607 = vmul.f32 %v48, %v546
    %v608 = vmul.f32 %v49, %v551
    %v609 = vmul.f32 %v50, %v551
    %v610 = vmul.f32 %v51, %v556
    %v611 = vmul.f32 %v52, %v556
    %v612 = vmul.f32 %v53, %v561
    %v613 = vmul.f32 %v54, %v561
    %v614 = vmul.f32 %v55, %v566
    %v615 = vmul.f32 %v56, %v566
    %v616 = vmul.f32 %v57, %v571
    %v617 = vmul.f32 %v58, %v571
    %v618 = vmul.f32 %v59, %v576
    %v619 = vmul.f32 %v60, %v576
    %v620 = vmul.f32 %v61, %v581
    %v621 = vmul.f32 %v62, %v581
    %v622 = vmul.f32 %v63, %v586
    %v623 = vmul.f32 %v64, %v586
    %625 = vset.pattern.permute.xlu0 1
    %626 = vperm.xlu0 %625, %v480
    %v627 = vpop.permute.xlu0 %626
    %630 = vset.pattern.permute.xlu0 1
    %631 = vperm.xlu0 %630, %v481
    %v632 = vpop.permute.xlu0 %631
    %635 = vset.pattern.permute.xlu0 1
    %636 = vperm.xlu0 %635, %v482
    %v637 = vpop.permute.xlu0 %636
    %640 = vset.pattern.permute.xlu0 1
    %641 = vperm.xlu0 %640, %v483
    %v642 = vpop.permute.xlu0 %641
    %645 = vset.pattern.permute.xlu0 1
    %646 = vperm.xlu0 %645, %v484
    %v647 = vpop.permute.xlu0 %646
    %650 = vset.pattern.permute.xlu0 1
    %651 = vperm.xlu0 %650, %v485
    %v652 = vpop.permute.xlu0 %651
    %655 = vset.pattern.permute.xlu0 1
    %656 = vperm.xlu0 %655, %v486
    %v657 = vpop.permute.xlu0 %656
    %660 = vset.pattern.permute.xlu0 1
    %661 = vperm.xlu0 %660, %v487
    %v662 = vpop.permute.xlu0 %661
    %665 = vset.pattern.permute.xlu0 1
    %666 = vperm.xlu0 %665, %v488
    %v667 = vpop.permute.xlu0 %666
    %670 = vset.pattern.permute.xlu0 1
    %671 = vperm.xlu0 %670, %v489
    %v672 = vpop.permute.xlu0 %671
    %675 = vset.pattern.permute.xlu0 1
    %676 = vperm.xlu0 %675, %v490
    %v677 = vpop.permute.xlu0 %676
    %680 = vset.pattern.permute.xlu0 1
    %681 = vperm.xlu0 %680, %v491
    %v682 = vpop.permute.xlu0 %681
    %685 = vset.pattern.permute.xlu0 1
    %686 = vperm.xlu0 %685, %v492
    %v687 = vpop.permute.xlu0 %686
    %690 = vset.pattern.permute.xlu0 1
    %691 = vperm.xlu0 %690, %v493
    %v692 = vpop.permute.xlu0 %691
    %695 = vset.pattern.permute.xlu0 1
    %696 = vperm.xlu0 %695, %v494
    %v697 = vpop.permute.xlu0 %696
    %700 = vset.pattern.permute.xlu0 1
    %701 = vperm.xlu0 %700, %v495
    %v702 = vpop.permute.xlu0 %701
    %705 = vset.pattern.permute.xlu0 1
    %706 = vperm.xlu0 %705, %v496
    %v707 = vpop.permute.xlu0 %706
    %710 = vset.pattern.permute.xlu0 1
    %711 = vperm.xlu0 %710, %v497
    %v712 = vpop.permute.xlu0 %711
    %v714 = vadd.f32 %v588, %v627
    %v715 = vadd.f32 %v589, %v627
    %v716 = vadd.f32 %v590, %v632
    %v717 = vadd.f32 %v591, %v632
    %v718 = vadd.f32 %v592, %v637
    %v719 = vadd.f32 %v593, %v637
    %v720 = vadd.f32 %v594, %v642
    %v721 = vadd.f32 %v595, %v642
    %v722 = vadd.f32 %v596, %v647
    %v723 = vadd.f32 %v597, %v647
    %v724 = vadd.f32 %v598, %v652
    %v725 = vadd.f32 %v599, %v652
    %v726 = vadd.f32 %v600, %v657
    %v727 = vadd.f32 %v601, %v657
    %v728 = vadd.f32 %v602, %v662
    %v729 = vadd.f32 %v603, %v662
    %v730 = vadd.f32 %v604, %v667
    %v731 = vadd.f32 %v605, %v667
    %v732 = vadd.f32 %v606, %v672
    %v733 = vadd.f32 %v607, %v672
    %v734 = vadd.f32 %v608, %v677
    %v735 = vadd.f32 %v609, %v677
    %v736 = vadd.f32 %v610, %v682
    %v737 = vadd.f32 %v611, %v682
    %v738 = vadd.f32 %v612, %v687
    %v739 = vadd.f32 %v613, %v687
    %v740 = vadd.f32 %v614, %v692
    %v741 = vadd.f32 %v615, %v692
    %v742 = vadd.f32 %v616, %v697
    %v743 = vadd.f32 %v617, %v697
    %v744 = vadd.f32 %v618, %v702
    %v745 = vadd.f32 %v619, %v702
    %v746 = vadd.f32 %v620, %v707
    %v747 = vadd.f32 %v621, %v707
    %v748 = vadd.f32 %v622, %v712
    %v749 = vadd.f32 %v623, %v712
    %v750 = vld [vmem:[#allocation2] sm:$0xff]
    %v751 = vld [vmem:[#allocation2 + $0x8] sm:$0xff]
    %v752 = vld [vmem:[#allocation2 + $0x10] sm:$0xff]
    %v753 = vld [vmem:[#allocation2 + $0x18] sm:$0xff]
    %v754 = vld [vmem:[#allocation2 + $0x20] sm:$0xff]
    %v755 = vld [vmem:[#allocation2 + $0x28] sm:$0xff]
    %v756 = vld [vmem:[#allocation2 + $0x30] sm:$0xff]
    %v757 = vld [vmem:[#allocation2 + $0x38] sm:$0xff]
    %v758 = vld [vmem:[#allocation2 + $0x40] sm:$0xff]
    %v759 = vld [vmem:[#allocation2 + $0x48] sm:$0xff]
    %v760 = vld [vmem:[#allocation2 + $0x50] sm:$0xff]
    %v761 = vld [vmem:[#allocation2 + $0x58] sm:$0xff]
    %v762 = vld [vmem:[#allocation2 + $0x60] sm:$0xff]
    %v763 = vld [vmem:[#allocation2 + $0x68] sm:$0xff]
    %v764 = vld [vmem:[#allocation2 + $0x70] sm:$0xff]
    %v765 = vld [vmem:[#allocation2 + $0x78] sm:$0xff]
    %v766 = vld [vmem:[#allocation2 + $0x80] sm:$0xff]
    %v767 = vld [vmem:[#allocation2 + $0x88] sm:$0xff]
    %v768 = vld [vmem:[#allocation2 + $0x90] sm:$0xff]
    %v769 = vld [vmem:[#allocation2 + $0x98] sm:$0xff]
    %v770 = vld [vmem:[#allocation2 + $0xa0] sm:$0xff]
    %v771 = vld [vmem:[#allocation2 + $0xa8] sm:$0xff]
    %v772 = vld [vmem:[#allocation2 + $0xb0] sm:$0xff]
    %v773 = vld [vmem:[#allocation2 + $0xb8] sm:$0xff]
    %v774 = vld [vmem:[#allocation2 + $0xc0] sm:$0xff]
    %v775 = vld [vmem:[#allocation2 + $0xc8] sm:$0xff]
    %v776 = vld [vmem:[#allocation2 + $0xd0] sm:$0xff]
    %v777 = vld [vmem:[#allocation2 + $0xd8] sm:$0xff]
    %v778 = vld [vmem:[#allocation2 + $0xe0] sm:$0xff]
    %v779 = vld [vmem:[#allocation2 + $0xe8] sm:$0xff]
    %v780 = vld [vmem:[#allocation2 + $0xf0] sm:$0xff]
    %v781 = vld [vmem:[#allocation2 + $0xf8] sm:$0xff]
    %v782 = vld [vmem:[#allocation2 + $0x100] sm:$0xff]
    %v783 = vld [vmem:[#allocation2 + $0x108] sm:$0xff]
    %v784 = vld [vmem:[#allocation2 + $0x110] sm:$0xff]
    %v785 = vld [vmem:[#allocation2 + $0x118] sm:$0xff]
    %v786 = vadd.f32 %v714, %v750
    %v787 = vadd.f32 %v715, %v751
    %v788 = vadd.f32 %v716, %v752
    %v789 = vadd.f32 %v717, %v753
    %v790 = vadd.f32 %v718, %v754
    %v791 = vadd.f32 %v719, %v755
    %v792 = vadd.f32 %v720, %v756
    %v793 = vadd.f32 %v721, %v757
    %v794 = vadd.f32 %v722, %v758
    %v795 = vadd.f32 %v723, %v759
    %v796 = vadd.f32 %v724, %v760
    %v797 = vadd.f32 %v725, %v761
    %v798 = vadd.f32 %v726, %v762
    %v799 = vadd.f32 %v727, %v763
    %v800 = vadd.f32 %v728, %v764
    %v801 = vadd.f32 %v729, %v765
    %v802 = vadd.f32 %v730, %v766
    %v803 = vadd.f32 %v731, %v767
    %v804 = vadd.f32 %v732, %v768
    %v805 = vadd.f32 %v733, %v769
    %v806 = vadd.f32 %v734, %v770
    %v807 = vadd.f32 %v735, %v771
    %v808 = vadd.f32 %v736, %v772
    %v809 = vadd.f32 %v737, %v773
    %v810 = vadd.f32 %v738, %v774
    %v811 = vadd.f32 %v739, %v775
    %v812 = vadd.f32 %v740, %v776
    %v813 = vadd.f32 %v741, %v777
    %v814 = vadd.f32 %v742, %v778
    %v815 = vadd.f32 %v743, %v779
    %v816 = vadd.f32 %v744, %v780
    %v817 = vadd.f32 %v745, %v781
    %v818 = vadd.f32 %v746, %v782
    %v819 = vadd.f32 %v747, %v783
    %v820 = vadd.f32 %v748, %v784
    %v821 = vadd.f32 %v749, %v785
    %822 = vst [vmem:[#allocation5] sm:$0xff] %v786
    %823 = vst.msk [vmem:[#allocation5 + $0x8] sm:$0xff] %vm65, %v787
    %824 = vst [vmem:[#allocation5 + $0x10] sm:$0xff] %v788
    %825 = vst.msk [vmem:[#allocation5 + $0x18] sm:$0xff] %vm65, %v789
    %826 = vst [vmem:[#allocation5 + $0x20] sm:$0xff] %v790
    %827 = vst.msk [vmem:[#allocation5 + $0x28] sm:$0xff] %vm65, %v791
    %828 = vst [vmem:[#allocation5 + $0x30] sm:$0xff] %v792
    %829 = vst.msk [vmem:[#allocation5 + $0x38] sm:$0xff] %vm65, %v793
    %830 = vst [vmem:[#allocation5 + $0x40] sm:$0xff] %v794
    %831 = vst.msk [vmem:[#allocation5 + $0x48] sm:$0xff] %vm65, %v795
    %832 = vst [vmem:[#allocation5 + $0x50] sm:$0xff] %v796
    %833 = vst.msk [vmem:[#allocation5 + $0x58] sm:$0xff] %vm65, %v797
    %834 = vst [vmem:[#allocation5 + $0x60] sm:$0xff] %v798
    %835 = vst.msk [vmem:[#allocation5 + $0x68] sm:$0xff] %vm65, %v799
    %836 = vst [vmem:[#allocation5 + $0x70] sm:$0xff] %v800
    %837 = vst.msk [vmem:[#allocation5 + $0x78] sm:$0xff] %vm65, %v801
    %838 = vst [vmem:[#allocation5 + $0x80] sm:$0xff] %v802
    %839 = vst.msk [vmem:[#allocation5 + $0x88] sm:$0xff] %vm65, %v803
    %840 = vst [vmem:[#allocation5 + $0x90] sm:$0xff] %v804
    %841 = vst.msk [vmem:[#allocation5 + $0x98] sm:$0xff] %vm65, %v805
    %842 = vst [vmem:[#allocation5 + $0xa0] sm:$0xff] %v806
    %843 = vst.msk [vmem:[#allocation5 + $0xa8] sm:$0xff] %vm65, %v807
    %844 = vst [vmem:[#allocation5 + $0xb0] sm:$0xff] %v808
    %845 = vst.msk [vmem:[#allocation5 + $0xb8] sm:$0xff] %vm65, %v809
    %846 = vst [vmem:[#allocation5 + $0xc0] sm:$0xff] %v810
    %847 = vst.msk [vmem:[#allocation5 + $0xc8] sm:$0xff] %vm65, %v811
    %848 = vst [vmem:[#allocation5 + $0xd0] sm:$0xff] %v812
    %849 = vst.msk [vmem:[#allocation5 + $0xd8] sm:$0xff] %vm65, %v813
    %850 = vst [vmem:[#allocation5 + $0xe0] sm:$0xff] %v814
    %851 = vst.msk [vmem:[#allocation5 + $0xe8] sm:$0xff] %vm65, %v815
    %852 = vst [vmem:[#allocation5 + $0xf0] sm:$0xff] %v816
    %853 = vst.msk [vmem:[#allocation5 + $0xf8] sm:$0xff] %vm65, %v817
    %854 = vst [vmem:[#allocation5 + $0x100] sm:$0xff] %v818
    %855 = vst.msk [vmem:[#allocation5 + $0x108] sm:$0xff] %vm65, %v819
    %856 = vst [vmem:[#allocation5 + $0x110] sm:$0xff] %v820
    %857 = vst.msk [vmem:[#allocation5 + $0x118] sm:$0xff] %vm65, %v821
    // Predicated region
    $region18: #{tpu_custom_call.1} parent=1 // pred_check
      _
    $region19: #{tpu_custom_call.1} parent=1 // pred_check_branch
      %859 = sbr.rel (0) target = $region21
    $region20: #{tpu_custom_call.1} parent=1 // pred_region
      %s861 = ssub.s32 4608, 4608
      %862 = vsyncadd [#allocation4], %s861
      %s863 = sshll.u32 [#allocation5], 4
      %s864 = int_to_ptr.vmem [resolvable:$true] %s863
      %869 = dma.vmem_to_hbm [thread:$0]  %s864, 4608, %s3, [#allocation4], 256, 256, 16
    $region21: #{tpu_custom_call.1} parent=1 // pred_fallthru
      _
    // Predicated region
    $region22: #{tpu_custom_call.1} parent=1 // pred_check
      _
    $region23: #{tpu_custom_call.1} parent=1 // pred_check_branch
      %871 = sbr.rel (0) target = $region25
    $region24: #{tpu_custom_call.1} parent=1 // pred_region
      %872 = dma.done [#allocation4], 4608
    $region25: #{tpu_custom_call.1} parent=1 // pred_fallthru
      _
    %873 = vsyncpa [#allocation3], 1
    %874 = vsyncpa [#allocation4], 1

</llo_original>
